<compile_context>
chip_gen: v7x
topology: tpu7x:2x2x1
jax: 0.10.0
libtpu: 0.0.40
codegen_flags: <defaults>
</compile_context>

<pallas_src>
import jax
import jax.numpy as jnp
from jax.experimental import pallas as pl
from jax.experimental.pallas import tpu as pltpu


def _hf_rope_kernel(x_ref, cos_ref, sin_ref, o_ref):
    # HF rope: out = x*cos + rotate_half(x)*sin, single lane-dense store.
    x = x_ref[0].astype(jnp.float32)          # (TS, D)
    cos = cos_ref[...].astype(jnp.float32)    # (TS, D)
    sin = sin_ref[...].astype(jnp.float32)    # (TS, D)
    h = x.shape[-1] // 2
    x1, x2 = x[:, :h], x[:, h:]
    c1, c2 = cos[:, :h], cos[:, h:]
    s1, s2 = sin[:, :h], sin[:, h:]
    out = jnp.concatenate([x1 * c1 - x2 * s1, x2 * c2 + x1 * s2], axis=-1)
    o_ref[0] = out.astype(o_ref.dtype)        # one full-width store


def _interleaved_rope_kernel(x_ref, cos_ref, sin_ref, o_ref):
    # non-HF rope: de-interleave even/odd lanes in-register, single store.
    # TODO(synk): for bf16 inputs a pltpu.bitcast-based pair unpack would avoid
    # the strided lane slice; kept the simple slice for lowering robustness.
    x = x_ref[0].astype(jnp.float32)          # (TS, D)
    cos = cos_ref[...].astype(jnp.float32)    # (TS, D//2)
    sin = sin_ref[...].astype(jnp.float32)    # (TS, D//2)
    xr = x[:, 0::2]                           # even lanes
    xi = x[:, 1::2]                           # odd lanes
    out = jnp.concatenate([xr * cos - xi * sin, xr * sin + xi * cos], axis=-1)
    o_ref[0] = out.astype(o_ref.dtype)        # one full-width store


def _pick_seq_tile(S, D, fw, itemsize, target_bytes, mult):
    """Largest seq-tile whose per-row VMEM footprint (x + out + cos + sin)
    stays under target_bytes, respecting the (8,128) tiling rule."""
    row_bytes = (2 * D + 2 * fw) * itemsize
    rows_cap = max(mult, target_bytes // max(1, row_bytes))
    if S <= rows_cap:
        return S
    rows_cap = max(mult, (rows_cap // mult) * mult)
    for ts in range(rows_cap, mult - 1, -mult):
        if S % ts == 0:
            return ts
    return rows_cap  # ragged last tile: out-of-range writes are masked


def rope_forward(x, freqs_cos, freqs_sin, use_hf_rope: bool,
                 *, target_block_bytes=2 << 20):
    """Pallas implementation of _Rope.forward.

    x:          [B, S, D]
    freqs_cos:  [S, D] (HF) or [S, D//2] (non-HF); leading [1, S, *] accepted.
    freqs_sin:  same shape as freqs_cos.
    """
    B, S, D = x.shape
    assert D % 2 == 0, "head dim must be even for rope"
    if freqs_cos.ndim == 3:
        freqs_cos = freqs_cos[0]
    if freqs_sin.ndim == 3:
        freqs_sin = freqs_sin[0]
    fw = D if use_hf_rope else D // 2
    assert freqs_cos.shape == (S, fw) and freqs_sin.shape == (S, fw)

    # Match x's dtype so freq HBM reads cost the same bytes as x reads
    # (kernel upcasts to f32 before the rotation math).
    freqs_cos = freqs_cos.astype(x.dtype)
    freqs_sin = freqs_sin.astype(x.dtype)

    itemsize = jnp.dtype(x.dtype).itemsize
    mult = 8 if itemsize >= 4 else 16
    TS = _pick_seq_tile(S, D, fw, itemsize, target_block_bytes, mult)
    # Guarantee >=2 grid steps for the v7x megacore when shapes allow it.
    if B * pl.cdiv(S, TS) < 2 and S >= 2 * mult:
        TS = ((S + 1) // 2 + mult - 1) // mult * mult

    n_s = pl.cdiv(S, TS)
    kernel = _hf_rope_kernel if use_hf_rope else _interleaved_rope_kernel
    return pl.pallas_call(
        kernel,
        out_shape=jax.ShapeDtypeStruct((B, S, D), x.dtype),
        # Seq-tiles outer, batch inner: cos/sin block index is constant across
        # consecutive (inner) steps, so Pallas does not re-DMA them per batch.
        grid=(n_s, B),
        in_specs=[
            pl.BlockSpec((1, TS, D), lambda s, b: (b, s, 0)),
            pl.BlockSpec((TS, fw), lambda s, b: (s, 0)),
            pl.BlockSpec((TS, fw), lambda s, b: (s, 0)),
        ],
        out_specs=pl.BlockSpec((1, TS, D), lambda s, b: (b, s, 0)),
        compiler_params=pltpu.CompilerParams(
            dimension_semantics=("parallel", "parallel"),
            vmem_limit_bytes=48 * 1024 * 1024,
        ),
    )(x, freqs_cos, freqs_sin)


def rope_ref(x, freqs_cos, freqs_sin, use_hf_rope: bool):
    """Plain-JAX reference matching the PyTorch module exactly."""
    if freqs_cos.ndim == 2:
        freqs_cos = freqs_cos[None]
    if freqs_sin.ndim == 2:
        freqs_sin = freqs_sin[None]
    if use_hf_rope:
        d = x.shape[-1]
        x1, x2 = x[..., : d // 2], x[..., d // 2:]
        x_rot = jnp.concatenate((-x2, x1), axis=-1)
        return x * freqs_cos + x_rot * freqs_sin
    else:
        x_r, x_i = x[..., 0::2], x[..., 1::2]
        out_r = x_r * freqs_cos - x_i * freqs_sin
        out_i = x_r * freqs_sin + x_i * freqs_cos
        return jnp.concatenate([out_r, out_i], axis=-1)


if __name__ == "__main__":
    B, S, D = 2, 16, 32  # batch, seq, head_dim (small, deterministic)

    key = jax.random.PRNGKey(0)
    kx, kc1, ks1, kc2, ks2 = jax.random.split(key, 5)
    x = jax.random.normal(kx, (B, S, D), dtype=jnp.float32)

    # HF rope uses full-width freqs [S, D]; non-HF uses half-width [S, D//2].
    freqs_cos_hf = jax.random.uniform(kc1, (S, D), jnp.float32, -1, 1)
    freqs_sin_hf = jax.random.uniform(ks1, (S, D), jnp.float32, -1, 1)
    freqs_cos = jax.random.uniform(kc2, (S, D // 2), jnp.float32, -1, 1)
    freqs_sin = jax.random.uniform(ks2, (S, D // 2), jnp.float32, -1, 1)

    # use_hf_rope = True path (f32)
    out_hf = jax.block_until_ready(
        rope_forward(x, freqs_cos_hf, freqs_sin_hf, use_hf_rope=True))
    ref_hf = rope_ref(x, freqs_cos_hf, freqs_sin_hf, use_hf_rope=True)
    assert out_hf.shape == (B, S, D) and out_hf.dtype == x.dtype
    assert jnp.allclose(out_hf, ref_hf, atol=1e-5, rtol=1e-5)

    # use_hf_rope = False path (f32)
    out_il = jax.block_until_ready(
        rope_forward(x, freqs_cos, freqs_sin, use_hf_rope=False))
    ref_il = rope_ref(x, freqs_cos, freqs_sin, use_hf_rope=False)
    assert out_il.shape == (B, S, D) and out_il.dtype == x.dtype
    assert jnp.allclose(out_il, ref_il, atol=1e-5, rtol=1e-5)

    # Ragged seq-tile coverage: S=20 with a forced 8-row tile (masked last tile)
    S2 = 20
    kx2, kc3, ks3 = jax.random.split(jax.random.PRNGKey(1), 3)
    x2 = jax.random.normal(kx2, (B, S2, D), dtype=jnp.float32)
    fc2 = jax.random.uniform(kc3, (S2, D // 2), jnp.float32, -1, 1)
    fs2 = jax.random.uniform(ks3, (S2, D // 2), jnp.float32, -1, 1)
    out_rag = jax.block_until_ready(
        rope_forward(x2, fc2, fs2, use_hf_rope=False, target_block_bytes=1024))
    ref_rag = rope_ref(x2, fc2, fs2, use_hf_rope=False)
    assert jnp.allclose(out_rag, ref_rag, atol=1e-5, rtol=1e-5)

    # bf16 input with f32 freqs (exercises the wrapper-side freq cast)
    x_bf = x.astype(jnp.bfloat16)
    out_bf = jax.block_until_ready(
        rope_forward(x_bf, freqs_cos_hf, freqs_sin_hf, use_hf_rope=True))
    ref_bf = rope_ref(x_bf.astype(jnp.float32),
                      freqs_cos_hf.astype(jnp.bfloat16).astype(jnp.float32),
                      freqs_sin_hf.astype(jnp.bfloat16).astype(jnp.float32),
                      use_hf_rope=True)
    assert out_bf.dtype == jnp.bfloat16
    assert jnp.allclose(out_bf.astype(jnp.float32), ref_bf, atol=3e-2, rtol=3e-2)

    print("KERNEL_OK")
</pallas_src>

<mosaic_0001>
module attributes {stable_mosaic.version = 11 : i64} {
  func.func @_hf_rope_kernel(%arg0: i32, %arg1: i32, %arg2: memref<1x16x32xf32, #tpu.memory_space<vmem>>, %arg3: memref<16x32xf32, #tpu.memory_space<vmem>>, %arg4: memref<16x32xf32, #tpu.memory_space<vmem>>, %arg5: memref<1x16x32xf32, #tpu.memory_space<vmem>>) attributes {dimension_semantics = [#tpu.dimension_semantics<parallel>, #tpu.dimension_semantics<parallel>], iteration_bounds = array<i64: 1, 2>, scalar_prefetch = 0 : i64, scratch_operands = 0 : i64, tpu.core_type = #tpu.core_type<tc>, window_params = [{transform_indices = @transform_0, window_bounds = array<i64: 1, 16, 32>}, {transform_indices = @transform_1, window_bounds = array<i64: 16, 32>}, {transform_indices = @transform_2, window_bounds = array<i64: 16, 32>}, {transform_indices = @transform_3, window_bounds = array<i64: 1, 16, 32>}]} {
    %c0 = arith.constant 0 : index
    %c0_0 = arith.constant 0 : index
    %c0_1 = arith.constant 0 : index
    %0 = vector.load %arg2[%c0, %c0_0, %c0_1] : memref<1x16x32xf32, #tpu.memory_space<vmem>>, vector<1x16x32xf32>
    %1 = vector.shape_cast %0 : vector<1x16x32xf32> to vector<16x32xf32>
    %c0_2 = arith.constant 0 : index
    %c0_3 = arith.constant 0 : index
    %2 = vector.load %arg3[%c0_2, %c0_3] : memref<16x32xf32, #tpu.memory_space<vmem>>, vector<16x32xf32>
    %c0_4 = arith.constant 0 : index
    %c0_5 = arith.constant 0 : index
    %3 = vector.load %arg4[%c0_4, %c0_5] : memref<16x32xf32, #tpu.memory_space<vmem>>, vector<16x32xf32>
    %4 = vector.extract_strided_slice %1 {offsets = [0, 0], sizes = [16, 16], strides = [1, 1]} : vector<16x32xf32> to vector<16x16xf32>
    %5 = vector.extract_strided_slice %1 {offsets = [0, 16], sizes = [16, 16], strides = [1, 1]} : vector<16x32xf32> to vector<16x16xf32>
    %6 = vector.extract_strided_slice %2 {offsets = [0, 0], sizes = [16, 16], strides = [1, 1]} : vector<16x32xf32> to vector<16x16xf32>
    %7 = vector.extract_strided_slice %2 {offsets = [0, 16], sizes = [16, 16], strides = [1, 1]} : vector<16x32xf32> to vector<16x16xf32>
    %8 = vector.extract_strided_slice %3 {offsets = [0, 0], sizes = [16, 16], strides = [1, 1]} : vector<16x32xf32> to vector<16x16xf32>
    %9 = vector.extract_strided_slice %3 {offsets = [0, 16], sizes = [16, 16], strides = [1, 1]} : vector<16x32xf32> to vector<16x16xf32>
    %10 = arith.mulf %4, %6 : vector<16x16xf32>
    %11 = arith.mulf %5, %8 : vector<16x16xf32>
    %12 = arith.subf %10, %11 : vector<16x16xf32>
    %13 = arith.mulf %5, %7 : vector<16x16xf32>
    %14 = arith.mulf %4, %9 : vector<16x16xf32>
    %15 = arith.addf %13, %14 : vector<16x16xf32>
    %16 = tpu.concatenate %12, %15 in 1 : vector<16x16xf32>, vector<16x16xf32> -> vector<16x32xf32>
    %c0_6 = arith.constant 0 : index
    %c0_7 = arith.constant 0 : index
    %c0_8 = arith.constant 0 : index
    %17 = vector.load %arg5[%c0_6, %c0_7, %c0_8] : memref<1x16x32xf32, #tpu.memory_space<vmem>>, vector<1x16x32xf32>
    %18 = vector.shape_cast %17 : vector<1x16x32xf32> to vector<16x32xf32>
    %19 = vector.shape_cast %16 : vector<16x32xf32> to vector<1x16x32xf32>
    tpu.vector_store %arg5[%c0_6, %c0_7, %c0_8], %19 {strides = array<i32>} : memref<1x16x32xf32, #tpu.memory_space<vmem>>, vector<1x16x32xf32>,
    return
  }
  func.func @transform_0(%arg0: i32, %arg1: i32) -> (i32, i32, i32) {
    %c0_i32 = arith.constant 0 : i32
    %c0_i32_0 = arith.constant 0 : i32
    return %arg1, %arg0, %c0_i32 : i32, i32, i32
  }
  func.func @transform_1(%arg0: i32, %arg1: i32) -> (i32, i32) {
    %c0_i32 = arith.constant 0 : i32
    %c0_i32_0 = arith.constant 0 : i32
    return %arg0, %c0_i32 : i32, i32
  }
  func.func @transform_2(%arg0: i32, %arg1: i32) -> (i32, i32) {
    %c0_i32 = arith.constant 0 : i32
    %c0_i32_0 = arith.constant 0 : i32
    return %arg0, %c0_i32 : i32, i32
  }
  func.func @transform_3(%arg0: i32, %arg1: i32) -> (i32, i32, i32) {
    %c0_i32 = arith.constant 0 : i32
    %c0_i32_0 = arith.constant 0 : i32
    return %arg1, %arg0, %c0_i32 : i32, i32, i32
  }
}

</mosaic_0001>

<llo_original>
// kernel: tpu_custom_call.1
$region0: #{tpu_custom_call.1}
  #allocation0 [shape = 'u32[]', space=smem, size = 0x4, offset = 0x4, fixed_abs, tag = 'smem constant byte address 0x4 - core index']
  #allocation1 [shape = 'u32[144,128]{1,0:T(1,128)}', space=vmem, size = 0x12000, scoped, tag = 'internal scratch']
  %s0 = inlined_call_operand.hbm [shape: f32[2,16,32], index: 0, kind: input, shape index: {}]
  %s1 = inlined_call_operand.hbm [shape: f32[16,32], index: 1, kind: input, shape index: {}]
  %s2 = inlined_call_operand.hbm [shape: f32[16,32], index: 2, kind: input, shape index: {}]
  %s3 = inlined_call_operand.hbm [shape: f32[2,16,32], index: 3, kind: output, shape index: {}]
  %s4 = sld [smem:[#allocation0]]
  $region57: #{tpu_custom_call.1} parent=0
    _
  %s6 = ssub.s32 1, %s4
  %s7 = scalar_select 0, %s6, %s4
  $region1: #{tpu_custom_call.1} parent=0
    #allocation2 [shape = 'u8[16384]{0}', space=vmem, size = 0x4000, scoped, tag = 'input window, operand 0']
    #allocation3 [shape = 's32[2]{0}', space=sflag, size = 0x8, scoped, tag = 'scoped memory for tpu_custom_call.1']
    #allocation4 [shape = 's32[2]{0}', space=sflag, size = 0x8, scoped, tag = 'scoped memory for tpu_custom_call.1']
    #allocation5 [shape = 'u8[8192]{0}', space=vmem, size = 0x2000, scoped, tag = 'input window, operand 1, single buffered']
    #allocation6 [shape = 's32[1]{0}', space=sflag, size = 0x4, scoped, tag = 'scoped memory for tpu_custom_call.1']
    #allocation7 [shape = 'u8[8192]{0}', space=vmem, size = 0x2000, scoped, tag = 'input window, operand 2, single buffered']
    #allocation8 [shape = 'u8[16384]{0}', space=vmem, size = 0x4000, scoped, tag = 'output window, operand 0']
    %8 = vsyncpa [#allocation3], 0
    %s9 = scalar_lea.sflag [#allocation3], 1
    %10 = vsyncpa %s9, 0
    %11 = vsyncpa [#allocation6], 0
    %12 = vsyncpa [#allocation4], 0
    %s13 = scalar_lea.sflag [#allocation4], 1
    %14 = vsyncpa %s13, 0
    loop: start=0, step=1, limit=4
    $region2: #{tpu_custom_call.1} parent=1 // loop_pre_header
      _
    $region3: #{tpu_custom_call.1} parent=1 // loop_header
      %s16 = sphi 0, %s20
      %p17 = scmp.ge.s32.totalorder %s16, 4
      %s23 = sphi 0, %s35
      %s24 = sphi 0, %s31
      %s25 = sphi 0, %s23
      %s26 = sphi 0, %s24
      %s27 = sphi 0, %s25
      %s28 = sphi 0, %s26
      %s40 = sphi 0, %s42
      %s43 = sphi 0, %s40
      %s44 = sphi 0, %s43
      %s60 = sphi 0, %s44
      %s66 = sphi 0, %s68
      %s69 = sphi 0, %s66
      %s70 = sphi 0, %s69
      %s86 = sphi 0, %s70
      %s92 = sphi 0, %s94
      %s95 = sphi 0, %s92
      %s96 = sphi 0, %s95
      %s112 = sphi 0, %s96
      %s120 = sphi 0, %s122
      %s123 = sphi 0, %s120
      %s124 = sphi 0, %s123
      %s140 = sphi 0, %s124
    $region4: #{tpu_custom_call.1} parent=1 // loop_header_branch
      %19 = sbr.rel (%p17) target = $region8
    $region5: #{tpu_custom_call.1} parent=1 // loop_body
      %s21 = ssub.s32 %s16, 1
      %s22 = ssub.s32 %s16, 2
      %s29 = sadd.s32 1, %s24
      %p30 = scmp.ge.s32.totalorder %s29, 2
      %s31 = scalar_select %p30, 0, %s29
      %s32 = sadd.s32 1, %s23
      %s33 = scalar_select %p30, %s32, %s23
      %p34 = scmp.ge.s32.totalorder %s33, 1
      %s35 = scalar_select %p34, 0, %s33
      %s36 = ssub.s32 %s24, %s31
      %s37 = ssub.s32 %s23, %s35
      %s38 = sor.u32 %s36, %s37
      %p39 = scmp.eq.s32.totalorder %s38, 0
      %s41 = sadd.s32 %s40, 1
      %s42 = scalar_select %p39, %s40, %s41
      %p45 = pneg %p39
      %p46 = scmp.eq.s32.totalorder %s16, 1
      %p47 = por %p45, %p46
      %p48 = scmp.ne.s32.totalorder %s40, %s43
      %p49 = scmp.eq.s32.totalorder %s16, 0
      %p50 = por %p48, %p49
      %p51 = scmp.ne.s32.totalorder %s40, %s43
      %p52 = scmp.eq.s32.totalorder %s21, 1
      %p53 = por %p51, %p52
      %p54 = scmp.ne.s32.totalorder %s43, %s44
      %p55 = scmp.eq.s32.totalorder %s21, 0
      %p56 = por %p54, %p55
      %p57 = scmp.ne.s32.totalorder %s43, %s44
      %p58 = scmp.eq.s32.totalorder %s22, 1
      %p59 = por %p57, %p58
      %p61 = scmp.ne.s32.totalorder %s44, %s60
      %p62 = scmp.eq.s32.totalorder %s22, 0
      %p63 = por %p61, %p62
      %s64 = ssub.s32 %s23, %s35
      %p65 = scmp.eq.s32.totalorder %s64, 0
      %s67 = sadd.s32 %s66, 1
      %s68 = scalar_select %p65, %s66, %s67
      %p71 = pneg %p65
      %p72 = scmp.eq.s32.totalorder %s16, 1
      %p73 = por %p71, %p72
      %p74 = scmp.ne.s32.totalorder %s66, %s69
      %p75 = scmp.eq.s32.totalorder %s16, 0
      %p76 = por %p74, %p75
      %p77 = scmp.ne.s32.totalorder %s66, %s69
      %p78 = scmp.eq.s32.totalorder %s21, 1
      %p79 = por %p77, %p78
      %p80 = scmp.ne.s32.totalorder %s69, %s70
      %p81 = scmp.eq.s32.totalorder %s21, 0
      %p82 = por %p80, %p81
      %p83 = scmp.ne.s32.totalorder %s69, %s70
      %p84 = scmp.eq.s32.totalorder %s22, 1
      %p85 = por %p83, %p84
      %p87 = scmp.ne.s32.totalorder %s70, %s86
      %p88 = scmp.eq.s32.totalorder %s22, 0
      %p89 = por %p87, %p88
      %s90 = ssub.s32 %s23, %s35
      %p91 = scmp.eq.s32.totalorder %s90, 0
      %s93 = sadd.s32 %s92, 1
      %s94 = scalar_select %p91, %s92, %s93
      %p97 = pneg %p91
      %p98 = scmp.eq.s32.totalorder %s16, 1
      %p99 = por %p97, %p98
      %p100 = scmp.ne.s32.totalorder %s92, %s95
      %p101 = scmp.eq.s32.totalorder %s16, 0
      %p102 = por %p100, %p101
      %p103 = scmp.ne.s32.totalorder %s92, %s95
      %p104 = scmp.eq.s32.totalorder %s21, 1
      %p105 = por %p103, %p104
      %p106 = scmp.ne.s32.totalorder %s95, %s96
      %p107 = scmp.eq.s32.totalorder %s21, 0
      %p108 = por %p106, %p107
      %p109 = scmp.ne.s32.totalorder %s95, %s96
      %p110 = scmp.eq.s32.totalorder %s22, 1
      %p111 = por %p109, %p110
      %p113 = scmp.ne.s32.totalorder %s96, %s112
      %p114 = scmp.eq.s32.totalorder %s22, 0
      %p115 = por %p113, %p114
      %s116 = ssub.s32 %s24, %s31
      %s117 = ssub.s32 %s23, %s35
      %s118 = sor.u32 %s116, %s117
      %p119 = scmp.eq.s32.totalorder %s118, 0
      %s121 = sadd.s32 %s120, 1
      %s122 = scalar_select %p119, %s120, %s121
      %p125 = pneg %p119
      %p126 = scmp.eq.s32.totalorder %s16, 1
      %p127 = por %p125, %p126
      %p128 = scmp.ne.s32.totalorder %s120, %s123
      %p129 = scmp.eq.s32.totalorder %s16, 0
      %p130 = por %p128, %p129
      %p131 = scmp.ne.s32.totalorder %s120, %s123
      %p132 = scmp.eq.s32.totalorder %s21, 1
      %p133 = por %p131, %p132
      %p134 = scmp.ne.s32.totalorder %s123, %s124
      %p135 = scmp.eq.s32.totalorder %s21, 0
      %p136 = por %p134, %p135
      %p137 = scmp.ne.s32.totalorder %s123, %s124
      %p138 = scmp.eq.s32.totalorder %s22, 1
      %p139 = por %p137, %p138
      %p141 = scmp.ne.s32.totalorder %s124, %s140
      %p142 = scmp.eq.s32.totalorder %s22, 0
      %p143 = por %p141, %p142
      %p144 = scmp.le.s32.totalorder 1, %s16
      %p145 = scmp.lt.s32.totalorder %s16, 3
      %p146 = pnand %p144, %p145
      %p147 = pneg %p146
      // Predicated region
      $region9: #{tpu_custom_call.1} parent=5 // pred_check
        _
      $region10: #{tpu_custom_call.1} parent=5 // pred_check_branch
        %149 = sbr.rel (%p146) target = $region12
      $region11: #{tpu_custom_call.1} parent=5 // pred_region
        %s150 = ssub.s32 %s16, 1
        // Predicated region
        $region13: #{tpu_custom_call.1} parent=11 // pred_check
          %p151 = pneg %p82
        $region14: #{tpu_custom_call.1} parent=11 // pred_check_branch
          %153 = sbr.rel (%p151) target = $region16
        $region15: #{tpu_custom_call.1} parent=11 // pred_region
          %s154 = smul.u32 2, %s25
          %s156 = ssub.s32 256, 256
          %157 = vsyncadd [#allocation6], %s156
          %s158 = smul.addr %s154, 128
          %s159 = scalar_lea.hbm %s1, %s158
          %s160 = sshll.u32 [#allocation5], 4
          %s161 = int_to_ptr.vmem [resolvable:$true] %s160
          %166 = dma.hbm_to_vmem [thread:$0]  %s159, 256, %s161, [#allocation6], 128, 128, 8
        $region16: #{tpu_custom_call.1} parent=11 // pred_fallthru
          _
        // Predicated region
        $region17: #{tpu_custom_call.1} parent=11 // pred_check
          %p167 = pneg %p108
        $region18: #{tpu_custom_call.1} parent=11 // pred_check_branch
          %169 = sbr.rel (%p167) target = $region20
        $region19: #{tpu_custom_call.1} parent=11 // pred_region
          %s170 = smul.u32 2, %s25
          %s172 = ssub.s32 256, 256
          %173 = vsyncadd [#allocation6], %s172
          %s174 = smul.addr %s170, 128
          %s175 = scalar_lea.hbm %s2, %s174
          %s176 = sshll.u32 [#allocation7], 4
          %s177 = int_to_ptr.vmem [resolvable:$true] %s176
          %182 = dma.hbm_to_vmem [thread:$0]  %s175, 256, %s177, [#allocation6], 128, 128, 8
        $region20: #{tpu_custom_call.1} parent=11 // pred_fallthru
          _
      $region12: #{tpu_custom_call.1} parent=5 // pred_fallthru
        _
      %p183 = scmp.lt.s32.totalorder %s16, 2
      // Predicated region
      $region21: #{tpu_custom_call.1} parent=5 // pred_check
        %p184 = pneg %p183
      $region22: #{tpu_custom_call.1} parent=5 // pred_check_branch
        %186 = sbr.rel (%p184) target = $region24
      $region23: #{tpu_custom_call.1} parent=5 // pred_region
        // Predicated region
        $region25: #{tpu_custom_call.1} parent=23 // pred_check
          %p187 = pneg %p50
        $region26: #{tpu_custom_call.1} parent=23 // pred_check_branch
          %189 = sbr.rel (%p187) target = $region28
        $region27: #{tpu_custom_call.1} parent=23 // pred_region
          %s190 = sand.u32 %s40, 1
          %s191 = scalar_lea.sflag [#allocation3], %s190
          %s192 = sand.u32 %s40, 1
          %s193 = smul.addr %s192, 16
          %s194 = scalar_lea.vmem [#allocation2], %s193
          %s195 = smul.u32 2, %s23
          %s197 = ssub.s32 256, 256
          %198 = vsyncadd %s191, %s197
          %s199 = smul.addr %s24, 2
          %s200 = sadd.s32 %s195, %s199
          %s201 = smul.addr %s200, 128
          %s202 = scalar_lea.hbm %s0, %s201
          %s203 = sshll.u32 %s194, 4
          %s204 = int_to_ptr.vmem [resolvable:$true] %s203
          %209 = dma.hbm_to_vmem [thread:$0]  %s202, 256, %s204, %s191, 128, 128, 8
        $region28: #{tpu_custom_call.1} parent=23 // pred_fallthru
          _
      $region24: #{tpu_custom_call.1} parent=5 // pred_fallthru
        _
      %p210 = scmp.le.s32.totalorder 1, %s16
      %p211 = scmp.lt.s32.totalorder %s16, 3
      %p212 = pnand %p210, %p211
      %p213 = pneg %p212
      // Predicated region
      $region29: #{tpu_custom_call.1} parent=5 // pred_check
        _
      $region30: #{tpu_custom_call.1} parent=5 // pred_check_branch
        %215 = sbr.rel (%p212) target = $region32
      $region31: #{tpu_custom_call.1} parent=5 // pred_region
        %s216 = ssub.s32 %s16, 1
        %s217 = sand.u32 %s43, 1
        %s218 = scalar_lea.sflag [#allocation3], %s217
        %s219 = sand.u32 %s43, 1
        %s220 = smul.addr %s219, 16
        %s221 = scalar_lea.vmem [#allocation2], %s220
        // Predicated region
        $region33: #{tpu_custom_call.1} parent=31 // pred_check
          %p222 = pneg %p56
        $region34: #{tpu_custom_call.1} parent=31 // pred_check_branch
          %224 = sbr.rel (%p222) target = $region36
        $region35: #{tpu_custom_call.1} parent=31 // pred_region
          %225 = dma.done %s218, 256
        $region36: #{tpu_custom_call.1} parent=31 // pred_fallthru
          _
        // Predicated region
        $region37: #{tpu_custom_call.1} parent=31 // pred_check
          %p226 = pneg %p82
        $region38: #{tpu_custom_call.1} parent=31 // pred_check_branch
          %228 = sbr.rel (%p226) target = $region40
        $region39: #{tpu_custom_call.1} parent=31 // pred_region
          %229 = dma.done [#allocation6], 256
        $region40: #{tpu_custom_call.1} parent=31 // pred_fallthru
          _
        // Predicated region
        $region41: #{tpu_custom_call.1} parent=31 // pred_check
          %p230 = pneg %p108
        $region42: #{tpu_custom_call.1} parent=31 // pred_check_branch
          %232 = sbr.rel (%p230) target = $region44
        $region43: #{tpu_custom_call.1} parent=31 // pred_region
          %233 = dma.done [#allocation6], 256
        $region44: #{tpu_custom_call.1} parent=31 // pred_fallthru
          _
        %s234 = sand.u32 %s43, 1
        %s235 = scalar_lea.sflag [#allocation3], %s234
        %s236 = sand.u32 %s43, 1
        %s237 = smul.addr %s236, 16
        %s238 = scalar_lea.vmem [#allocation2], %s237
        %p239 = pneg %p56
        %p240 = pneg %p53
        %p241 = pneg %p82
        %p242 = pneg %p79
        %p243 = pneg %p108
        %p244 = pneg %p105
        %p245 = pneg %p136
        %p246 = pneg %p133
        %s247 = sand.u32 %s123, 1
        %s248 = scalar_lea.sflag [#allocation4], %s247
        %s249 = sand.u32 %s123, 1
        %s250 = smul.addr %s249, 16
        %s251 = scalar_lea.vmem [#allocation8], %s250
        %s252 = smul.u32 2, %s25
        %s253 = smul.u32 2, %s25
        %s254 = smul.u32 2, %s25
        %s255 = smul.u32 2, %s25
        %v256 = vld [vmem:[%s221] sm:$0xff]
        %v257 = vld [vmem:[%s221 + $0x8] sm:$0xff]
        %v258 = vld [vmem:[#allocation5] sm:$0xff]
        %v259 = vld [vmem:[#allocation5 + $0x8] sm:$0xff]
        %v260 = vld [vmem:[#allocation7] sm:$0xff]
        %v261 = vld [vmem:[#allocation7 + $0x8] sm:$0xff]
        %v262 = vmul.f32 %v256, %v258
        %v263 = vmul.f32 %v257, %v259
        %266 = vrot.lane.b32.xlu0 %v260, 16
        %v267 = vpop.permute.xlu0 %266
        %268 = vrot.lane.b32.xlu0 %v261, 16
        %v269 = vpop.permute.xlu0 %268
        %v272 = vmul.f32 %v256, %v267
        %v273 = vmul.f32 %v257, %v269
        %276 = vrot.lane.b32.xlu0 %v272, 112
        %v277 = vpop.permute.xlu0 %276
        %278 = vrot.lane.b32.xlu0 %v273, 112
        %v279 = vpop.permute.xlu0 %278
        %v282 = vsub.f32 %v262, %v277
        %v283 = vsub.f32 %v263, %v279
        %284 = vrot.lane.b32.xlu0 %v260, 112
        %v285 = vpop.permute.xlu0 %284
        %286 = vrot.lane.b32.xlu0 %v261, 112
        %v287 = vpop.permute.xlu0 %286
        %v290 = vmul.f32 %v256, %v285
        %v291 = vmul.f32 %v257, %v287
        %294 = vrot.lane.b32.xlu0 %v290, 16
        %v295 = vpop.permute.xlu0 %294
        %296 = vrot.lane.b32.xlu0 %v291, 16
        %v297 = vpop.permute.xlu0 %296
        %v300 = vadd.f32 %v262, %v295
        %v301 = vadd.f32 %v263, %v297
        %vm302 = vcmask 130048
        %v303 = vsel %vm302, %v282, %v300
        %v304 = vsel %vm302, %v283, %v301
        %vm305 = vcmask 261120
        %306 = vst.msk [vmem:[%s251] sm:$0xff] %vm305, %v303
        %307 = vst.msk [vmem:[%s251 + $0x8] sm:$0xff] %vm305, %v304
        %s308 = sand.u32 %s123, 1
        %s309 = scalar_lea.sflag [#allocation4], %s308
        %s310 = sand.u32 %s123, 1
        %s311 = smul.addr %s310, 16
        %s312 = scalar_lea.vmem [#allocation8], %s311
        // Predicated region
        $region45: #{tpu_custom_call.1} parent=31 // pred_check
          %p313 = pneg %p133
        $region46: #{tpu_custom_call.1} parent=31 // pred_check_branch
          %315 = sbr.rel (%p313) target = $region48
        $region47: #{tpu_custom_call.1} parent=31 // pred_region
          %s316 = smul.u32 2, %s25
          %s318 = ssub.s32 256, 256
          %319 = vsyncadd %s309, %s318
          %s320 = smul.addr %s26, 2
          %s321 = sadd.s32 %s316, %s320
          %s322 = smul.addr %s321, 128
          %s323 = scalar_lea.hbm %s3, %s322
          %s324 = sshll.u32 %s312, 4
          %s325 = int_to_ptr.vmem [resolvable:$true] %s324
          %330 = dma.vmem_to_hbm [thread:$0]  %s325, 256, %s323, %s309, 128, 128, 8
        $region48: #{tpu_custom_call.1} parent=31 // pred_fallthru
          _
      $region32: #{tpu_custom_call.1} parent=5 // pred_fallthru
        _
      %p331 = scmp.le.s32.totalorder 2, %s16
      // Predicated region
      $region49: #{tpu_custom_call.1} parent=5 // pred_check
        %p332 = pneg %p331
      $region50: #{tpu_custom_call.1} parent=5 // pred_check_branch
        %334 = sbr.rel (%p332) target = $region52
      $region51: #{tpu_custom_call.1} parent=5 // pred_region
        %s335 = ssub.s32 %s16, 2
        // Predicated region
        $region53: #{tpu_custom_call.1} parent=51 // pred_check
          %p336 = pneg %p139
        $region54: #{tpu_custom_call.1} parent=51 // pred_check_branch
          %338 = sbr.rel (%p336) target = $region56
        $region55: #{tpu_custom_call.1} parent=51 // pred_region
          %s339 = sand.u32 %s124, 1
          %s340 = scalar_lea.sflag [#allocation4], %s339
          %s341 = sand.u32 %s124, 1
          %s342 = smul.addr %s341, 16
          %s343 = scalar_lea.vmem [#allocation8], %s342
          %344 = dma.done %s340, 256
        $region56: #{tpu_custom_call.1} parent=51 // pred_fallthru
          _
      $region52: #{tpu_custom_call.1} parent=5 // pred_fallthru
        _
    $region6: #{tpu_custom_call.1} parent=1 // loop_footer
      %s20 = sadd.s32 1, %s16
    $region7: #{tpu_custom_call.1} parent=1 // loop_footer_branch
      %15 = sbr.rel target = $region3
    $region8: #{tpu_custom_call.1} parent=1 // loop_exit
      _
    %345 = vsyncpa [#allocation3], 1
    %s346 = scalar_lea.sflag [#allocation3], 1
    %347 = vsyncpa %s346, 1
    %348 = vsyncpa [#allocation6], 1
    %349 = vsyncpa [#allocation4], 1
    %s350 = scalar_lea.sflag [#allocation4], 1
    %351 = vsyncpa %s350, 1

</llo_original>
